<compile_context>
chip_gen: v7x
topology: tpu7x:2x2x1
jax: 0.10.0
libtpu: 0.0.40
codegen_flags: <defaults>
</compile_context>

<pallas_src>
import functools

import jax
import jax.numpy as jnp
from jax.experimental import pallas as pl
from jax.experimental.pallas import tpu as pltpu


def _round_up(x, m):
    return ((x + m - 1) // m) * m


def _sublane_multiple(dtype):
    # rows per native sublane tile: f32 -> 8, bf16 -> 16, int8/fp8 -> 32
    return 8 * max(4 // jnp.dtype(dtype).itemsize, 1)


# ----------------------------------------------------------------------------
# Pallas kernel: a fused stack of TemporalBlocks, one (batch, time-tile) step
# ----------------------------------------------------------------------------
def _tcn_stack_kernel(*args, layers, TL, halo_total, has_halo, halo_blk):
    """Fused forward for a stack of TemporalBlocks over one (batch, time) tile.

    `layers` is static per-layer metadata (K, dil, C_in, C_out, has_down,
    fold1, fold2).  The input window covers global times
    [t0 - halo_total, t0 + TL); each layer consumes 2*pad lanes from the left
    (halo recompute), so the last layer's output is exactly [t0, t0 + TL).
    """
    args = list(args)
    cur_ref = args.pop(0)                           # (1, C0, TL) current tile
    halo_ref = args.pop(0) if has_halo else None    # (1, C0, halo_blk)
    wrefs = []
    for lyr in layers:
        w1 = args.pop(0)                            # (C_out, K*C_in)
        b1 = args.pop(0)                            # (C_out, 1)
        w2 = args.pop(0)                            # (C_out, K*C_out)
        b2 = args.pop(0)                            # (C_out, 1)
        wd = args.pop(0) if lyr["has_down"] else None   # (C_out, C_in)
        bd = args.pop(0) if lyr["has_down"] else None   # (C_out, 1)
        wrefs.append((w1, b1, w2, b2, wd, bd))
    out_ref = args.pop(0)                           # (1, C_last, TL)

    t = pl.program_id(1)                            # time-tile index; t0 = t*TL
    x = cur_ref[0]                                  # (C0, TL), input dtype
    act_dtype = x.dtype

    # Extended causal window covering global times [t0 - halo_total, t0 + TL).
    if halo_total > 0:
        if has_halo:
            # Only the last `halo_total` lanes of the (>=128-lane) halo block
            # are used; everything left of global time 0 is zero (t == 0 tile).
            tail = halo_ref[0, :, halo_blk - halo_total:]
            tail = tail * (t > 0).astype(act_dtype)
            x = jnp.concatenate([tail, x], axis=1)
        else:
            # Single time tile: in-kernel causal zero padding.
            x = jnp.concatenate(
                [jnp.zeros((x.shape[0], halo_total), act_dtype), x], axis=1)

    def _causal_zero(v, n_neg):
        # Zero lanes whose global time < 0 (the first `n_neg` lanes of the
        # t == 0 tile's window); a no-op for every other tile.
        if n_neg <= 0:
            return v
        if not has_halo:
            thresh = n_neg                 # single tile: t is always 0
        else:
            thresh = n_neg - t * TL        # <= 0 for t >= 1 -> keep everything
        lane = jax.lax.broadcasted_iota(jnp.int32, v.shape, 1)
        return jnp.where(lane >= thresh, v, jnp.zeros_like(v))

    left = halo_total                      # lanes of the window left of t0
    for li, lyr in enumerate(layers):
        w1, b1, w2, b2, wd, bd = wrefs[li]
        K, dil = lyr["K"], lyr["dil"]
        C_in, C_out = lyr["C_in"], lyr["C_out"]
        pad = (K - 1) * dil

        # conv1's causal zero padding of this layer's input (layer 0's halo
        # tail was already zeroed above).
        if li > 0:
            x = _causal_zero(x, left)

        # ---- conv1 + bias + ReLU over [t0 - (left - pad), t0 + TL) ---------
        W1 = TL + left - pad
        if lyr["fold1"]:
            # Fold K taps into one matmul (contraction K*C_in, better MXU fill).
            taps = jnp.concatenate(
                [x[:, k * dil:k * dil + W1] for k in range(K)], axis=0)
            acc1 = jnp.dot(w1[...], taps, preferred_element_type=jnp.float32)
        else:
            acc1 = jnp.zeros((C_out, W1), jnp.float32)
            for k in range(K):             # K is a static Python int
                acc1 = acc1 + jnp.dot(
                    w1[:, k * C_in:(k + 1) * C_in],
                    x[:, k * dil:k * dil + W1],
                    preferred_element_type=jnp.float32)
        h1 = jnp.maximum(acc1 + b1[...].astype(jnp.float32), 0.0)
        # dropout1: identity at inference.
        # conv2 causally zero-pads h1 on the left.
        h1 = _causal_zero(h1, left - pad)
        h1 = h1.astype(act_dtype)          # keep MXU operands in input dtype

        # ---- conv2 + bias + ReLU over [t0 - (left - 2*pad), t0 + TL) -------
        W2 = TL + left - 2 * pad
        if lyr["fold2"]:
            taps2 = jnp.concatenate(
                [h1[:, k * dil:k * dil + W2] for k in range(K)], axis=0)
            acc2 = jnp.dot(w2[...], taps2, preferred_element_type=jnp.float32)
        else:
            acc2 = jnp.zeros((C_out, W2), jnp.float32)
            for k in range(K):
                acc2 = acc2 + jnp.dot(
                    w2[:, k * C_out:(k + 1) * C_out],
                    h1[:, k * dil:k * dil + W2],
                    preferred_element_type=jnp.float32)
        h2 = jnp.maximum(acc2 + b2[...].astype(jnp.float32), 0.0)
        # dropout2: identity at inference.

        # ---- residual (1x1 downsample when C_in != C_out) + final ReLU -----
        res_in = x[:, 2 * pad:]            # layer input on the output window
        if lyr["has_down"]:
            res = jnp.dot(wd[...], res_in, preferred_element_type=jnp.float32)
            res = res + bd[...].astype(jnp.float32)
        else:
            res = res_in.astype(jnp.float32)
        x = jnp.maximum(h2 + res, 0.0).astype(act_dtype)
        left -= 2 * pad

    out_ref[0] = x.astype(out_ref.dtype)


# ----------------------------------------------------------------------------
# Wrapper: tiling choices + pallas_call
# ----------------------------------------------------------------------------
def _act_bytes_per_lane(meta, itemsize, c0, c_last):
    """Rough per-lane VMEM bytes: pipelined in/out buffers + worst-layer temps."""
    work = 0
    for m in meta:
        w = ((m["K"] + 1) * (m["C_in"] + m["C_out"])) * itemsize \
            + 3 * m["C_out"] * 4
        work = max(work, w)
    return 2 * (c0 + c_last) * itemsize + work


def _choose_time_tile(L, N, base, per_lane_bytes, max_time_tile, vmem_budget):
    """Largest lane-dense time tile (multiple of `base`) under the VMEM budget."""
    if L <= base:
        return L, 1
    tl_cap = max(vmem_budget // max(per_lane_bytes, 1), base)
    tl_cap = max((tl_cap // base) * base, base)
    if max_time_tile is not None:
        tl_cap = min(tl_cap, max((max_time_tile // base) * base, base))
    L_pad_full = _round_up(L, base)
    tl = min(tl_cap, L_pad_full)
    if N == 1 and L_pad_full >= 2 * base:
        # v7x: keep >= 2 parallel grid blocks so both TensorCores get work.
        tl = min(tl, max(((L_pad_full // 2) // base) * base, base))
    tl = max((tl // base) * base, base)
    num_t = _round_up(L, tl) // tl
    if num_t == 1:
        return L, 1                        # single full-length block, no padding
    return tl, num_t


def tcn_stack_forward(x, layers, *, max_time_tile=8192, vmem_budget=16 << 20):
    """Fused forward of a list of prepared TemporalBlock params. x: (N, C, L)."""
    N, C0, L = x.shape
    if C0 != layers[0]["C_in"]:
        raise ValueError("input channels do not match the first layer")
    C_last = layers[-1]["C_out"]
    itemsize = jnp.dtype(x.dtype).itemsize
    sub = _sublane_multiple(x.dtype)

    meta = tuple(
        dict(K=p["K"], dil=p["dil"], C_in=p["C_in"], C_out=p["C_out"],
             has_down=p["has_down"],
             fold1=(p["C_in"] % sub == 0),   # fold taps only when the sublane
             fold2=(p["C_out"] % sub == 0))  # concat offsets are tile aligned
        for p in layers)
    halo_total = sum(2 * (m["K"] - 1) * m["dil"] for m in meta)

    base = max(_round_up(max(halo_total, 1), 128), 128)
    per_lane = _act_bytes_per_lane(meta, itemsize, C0, C_last)
    TL, num_t = _choose_time_tile(L, N, base, per_lane, max_time_tile,
                                  vmem_budget)

    has_halo = (num_t > 1) and (halo_total > 0)
    halo_blk = base if has_halo else 0

    L_pad = num_t * TL
    x_in = x if L_pad == L else jnp.pad(x, ((0, 0), (0, 0), (0, L_pad - L)))

    operands = [x_in]
    in_specs = [pl.BlockSpec((1, C0, TL), lambda b, t: (b, 0, t))]
    if has_halo:
        # Causal halo: the 128*k-lane chunk immediately left of the current
        # tile (clamped for t == 0, whose halo is zero-masked in the kernel).
        step = TL // halo_blk
        in_specs.append(pl.BlockSpec(
            (1, C0, halo_blk),
            lambda b, t, step=step: (b, 0, jnp.maximum(t * step - 1, 0))))
        operands.append(x_in)

    weight_bytes = 0
    for p in layers:
        ws = [p["w1f"], p["b1"], p["w2f"], p["b2"]]
        if p["has_down"]:
            ws += [p["wd"], p["bd"]]
        for a in ws:
            operands.append(a)
            in_specs.append(pl.BlockSpec(a.shape, lambda b, t: (0, 0)))
            weight_bytes += int(a.size) * jnp.dtype(a.dtype).itemsize

    kernel = functools.partial(
        _tcn_stack_kernel, layers=meta, TL=TL, halo_total=halo_total,
        has_halo=has_halo, halo_blk=halo_blk)

    est_vmem = (per_lane * (TL + halo_total) + 2 * C0 * halo_blk * itemsize
                + 2 * weight_bytes + (2 << 20))
    vmem_limit = int(min(max(2 * est_vmem, 32 << 20), 48 << 20))

    out = pl.pallas_call(
        kernel,
        out_shape=jax.ShapeDtypeStruct((N, C_last, L_pad), x.dtype),
        grid_spec=pltpu.PrefetchScalarGridSpec(
            num_scalar_prefetch=0,
            grid=(N, num_t),
            in_specs=in_specs,
            out_specs=pl.BlockSpec((1, C_last, TL), lambda b, t: (b, 0, t)),
        ),
        compiler_params=pltpu.CompilerParams(
            dimension_semantics=("parallel", "parallel"),
            vmem_limit_bytes=vmem_limit),
    )(*operands)
    return out if L_pad == L else out[:, :, :L]


def _group_layers(layers, max_halo=512, max_weight_bytes=6 << 20):
    """Split the stack into fusible groups bounded by halo width / weight VMEM."""
    groups, cur, halo, wbytes = [], [], 0, 0
    for p in layers:
        h = 2 * (p["K"] - 1) * p["dil"]
        ws = [p["w1f"], p["b1"], p["w2f"], p["b2"]]
        if p["has_down"]:
            ws += [p["wd"], p["bd"]]
        wb = sum(int(a.size) * jnp.dtype(a.dtype).itemsize for a in ws)
        if cur and (halo + h > max_halo or wbytes + wb > max_weight_bytes):
            groups.append(cur)
            cur, halo, wbytes = [], 0, 0
        cur.append(p)
        halo += h
        wbytes += wb
    if cur:
        groups.append(cur)
    return groups


def temporal_conv_net(x, prepared_params, *, max_time_tile=8192):
    """TemporalConvNet forward (inference). Fuses as many TemporalBlocks per
    pallas_call as the halo / weight-VMEM budget allows (typically the whole
    stack), so activations make one HBM round trip per group, not per layer."""
    out = x
    for group in _group_layers(prepared_params):
        out = tcn_stack_forward(out, group, max_time_tile=max_time_tile)
    return out


# ----------------------------------------------------------------------------
# Parameter construction + one-time kernel prep (glue)
# ----------------------------------------------------------------------------
def make_tcn_params(key, num_inputs, num_channels, kernel_size):
    """Random TCN parameters (PyTorch init: N(0, 0.01) conv weights).
    Conv weights stored as (K, C_out, C_in)."""
    params = []
    for i, c_out in enumerate(num_channels):
        c_in = num_inputs if i == 0 else num_channels[i - 1]
        key, k1, k2, k3, k4, k5, k6 = jax.random.split(key, 7)
        w1 = 0.01 * jax.random.normal(k1, (kernel_size, c_out, c_in), jnp.float32)
        b1 = 0.01 * jax.random.normal(k2, (c_out, 1), jnp.float32)
        w2 = 0.01 * jax.random.normal(k3, (kernel_size, c_out, c_out), jnp.float32)
        b2 = 0.01 * jax.random.normal(k4, (c_out, 1), jnp.float32)
        if c_in != c_out:
            wd = 0.01 * jax.random.normal(k5, (c_out, c_in), jnp.float32)
            bd = 0.01 * jax.random.normal(k6, (c_out, 1), jnp.float32)
        else:
            wd, bd = None, None
        params.append(dict(w1=w1, b1=b1, w2=w2, b2=b2, wd=wd, bd=bd,
                           dilation=2 ** i))
    return params


def prepare_tcn_params(params, kernel_size):
    """One-time prep for the kernel: fold the K taps into the matmul
    contraction dim ((K, C_out, C_in) -> (C_out, K*C_in)) and record static
    per-layer metadata.  Do this once at load time, not per forward call.

    TODO(synk): when loading trained PyTorch weights, fold the weight_norm
    g / v parameters into the effective conv weights here first.
    """
    prepared = []
    for p in params:
        K, c_out, c_in = p["w1"].shape
        assert K == kernel_size
        prepared.append(dict(
            w1f=jnp.transpose(p["w1"], (1, 0, 2)).reshape(c_out, K * c_in),
            b1=p["b1"],
            w2f=jnp.transpose(p["w2"], (1, 0, 2)).reshape(c_out, K * c_out),
            b2=p["b2"],
            wd=p["wd"], bd=p["bd"],
            K=K, dil=p["dilation"], C_in=c_in, C_out=c_out,
            has_down=p["wd"] is not None))
    return prepared


# ----------------------------------------------------------------------------
# Pure-JAX reference (semantics check only)
# ----------------------------------------------------------------------------
def _ref_block(x, p, K):
    dil = p["dilation"]
    pad = (K - 1) * dil
    L = x.shape[2]

    def causal_conv(h, w, b):
        hp = jnp.pad(h, ((0, 0), (0, 0), (pad, 0)))
        out = jnp.zeros((h.shape[0], w.shape[1], L), jnp.float32)
        for k in range(K):
            out = out + jnp.einsum('oc,ncl->nol', w[k],
                                   hp[:, :, k * dil:k * dil + L])
        return out + b[None]

    h1 = jax.nn.relu(causal_conv(x, p["w1"], p["b1"]))
    h2 = jax.nn.relu(causal_conv(h1, p["w2"], p["b2"]))
    if p["wd"] is None:
        res = x
    else:
        res = jnp.einsum('oc,ncl->nol', p["wd"], x) + p["bd"][None]
    return jax.nn.relu(h2 + res)


def _ref_tcn(x, params, K):
    out = x
    for p in params:
        out = _ref_block(out, p, K)
    return out


# ----------------------------------------------------------------------------
if __name__ == "__main__":
    key = jax.random.PRNGKey(0)
    kernel_size = 2

    # --- test 1: small shapes, single time tile, mixed fold / per-tap paths --
    N, num_inputs, L = 2, 4, 16
    num_channels = [8, 8]                 # two TemporalBlocks, dilations 1, 2
    key, kx, kp = jax.random.split(key, 3)
    x = jax.random.normal(kx, (N, num_inputs, L), jnp.float32)
    params = make_tcn_params(kp, num_inputs, num_channels, kernel_size)
    prepared = prepare_tcn_params(params, kernel_size)

    out = jax.block_until_ready(temporal_conv_net(x, prepared))
    ref = _ref_tcn(x, params, kernel_size)
    assert out.shape == (N, num_channels[-1], L)
    assert jnp.allclose(out, ref, atol=1e-4, rtol=1e-4), "mismatch (small case)"

    # --- test 2: 3-layer fused stack, tiled time axis with 128-lane causal
    #     halo, L not a multiple of 128 (exercises right-pad + slice path) ----
    N2, L2 = 2, 320
    num_channels2 = [8, 16, 16]           # dilations 1, 2, 4; downsample on 0,1
    key, kx2, kp2 = jax.random.split(key, 3)
    x2 = jax.random.normal(kx2, (N2, num_inputs, L2), jnp.float32)
    params2 = make_tcn_params(kp2, num_inputs, num_channels2, kernel_size)
    prepared2 = prepare_tcn_params(params2, kernel_size)

    out2 = jax.block_until_ready(
        temporal_conv_net(x2, prepared2, max_time_tile=128))
    ref2 = _ref_tcn(x2, params2, kernel_size)
    assert out2.shape == (N2, num_channels2[-1], L2)
    assert jnp.allclose(out2, ref2, atol=1e-4, rtol=1e-4), "mismatch (tiled case)"

    # --- test 3: same data with the default (VMEM-budget-driven) time tile ---
    out3 = jax.block_until_ready(temporal_conv_net(x2, prepared2))
    assert jnp.allclose(out3, ref2, atol=1e-4, rtol=1e-4), "mismatch (default tile)"

    print("KERNEL_OK")
</pallas_src>

<mosaic_0001>
module attributes {stable_mosaic.version = 11 : i64} {
  func.func @_tcn_stack_kernel(%arg0: i32, %arg1: i32, %arg2: memref<1x4x16xf32, #tpu.memory_space<vmem>>, %arg3: memref<8x8xf32, #tpu.memory_space<vmem>>, %arg4: memref<8x1xf32, #tpu.memory_space<vmem>>, %arg5: memref<8x16xf32, #tpu.memory_space<vmem>>, %arg6: memref<8x1xf32, #tpu.memory_space<vmem>>, %arg7: memref<8x4xf32, #tpu.memory_space<vmem>>, %arg8: memref<8x1xf32, #tpu.memory_space<vmem>>, %arg9: memref<8x16xf32, #tpu.memory_space<vmem>>, %arg10: memref<8x1xf32, #tpu.memory_space<vmem>>, %arg11: memref<8x16xf32, #tpu.memory_space<vmem>>, %arg12: memref<8x1xf32, #tpu.memory_space<vmem>>, %arg13: memref<1x8x16xf32, #tpu.memory_space<vmem>>) attributes {dimension_semantics = [#tpu.dimension_semantics<parallel>, #tpu.dimension_semantics<parallel>], iteration_bounds = array<i64: 2, 1>, scalar_prefetch = 0 : i64, scratch_operands = 0 : i64, tpu.core_type = #tpu.core_type<tc>, window_params = [{transform_indices = @transform_0, window_bounds = array<i64: 1, 4, 16>}, {pipeline_mode = #tpu.pipeline_mode<synchronous>, transform_indices = @transform_1, window_bounds = array<i64: 8, 8>}, {pipeline_mode = #tpu.pipeline_mode<synchronous>, transform_indices = @transform_2, window_bounds = array<i64: 8, 1>}, {pipeline_mode = #tpu.pipeline_mode<synchronous>, transform_indices = @transform_3, window_bounds = array<i64: 8, 16>}, {pipeline_mode = #tpu.pipeline_mode<synchronous>, transform_indices = @transform_4, window_bounds = array<i64: 8, 1>}, {pipeline_mode = #tpu.pipeline_mode<synchronous>, transform_indices = @transform_5, window_bounds = array<i64: 8, 4>}, {pipeline_mode = #tpu.pipeline_mode<synchronous>, transform_indices = @transform_6, window_bounds = array<i64: 8, 1>}, {pipeline_mode = #tpu.pipeline_mode<synchronous>, transform_indices = @transform_7, window_bounds = array<i64: 8, 16>}, {pipeline_mode = #tpu.pipeline_mode<synchronous>, transform_indices = @transform_8, window_bounds = array<i64: 8, 1>}, {pipeline_mode = #tpu.pipeline_mode<synchronous>, transform_indices = @transform_9, window_bounds = array<i64: 8, 16>}, {pipeline_mode = #tpu.pipeline_mode<synchronous>, transform_indices = @transform_10, window_bounds = array<i64: 8, 1>}, {transform_indices = @transform_11, window_bounds = array<i64: 1, 8, 16>}]} {
    %c0 = arith.constant 0 : index
    %c0_0 = arith.constant 0 : index
    %c0_1 = arith.constant 0 : index
    %0 = vector.load %arg2[%c0, %c0_0, %c0_1] : memref<1x4x16xf32, #tpu.memory_space<vmem>>, vector<1x4x16xf32>
    %1 = vector.shape_cast %0 : vector<1x4x16xf32> to vector<4x16xf32>
    %cst = arith.constant 0.000000e+00 : f32
    %2 = vector.broadcast %cst : f32 to vector<4x6xf32>
    %3 = tpu.concatenate %2, %1 in 1 : vector<4x6xf32>, vector<4x16xf32> -> vector<4x22xf32>
    %cst_2 = arith.constant 0.000000e+00 : f32
    %4 = vector.broadcast %cst_2 : f32 to vector<8x21xf32>
    %c0_3 = arith.constant 0 : index
    %c0_4 = arith.constant 0 : index
    %5 = vector.load %arg3[%c0_3, %c0_4] : memref<8x8xf32, #tpu.memory_space<vmem>>, vector<8x4xf32>
    %6 = vector.extract_strided_slice %3 {offsets = [0, 0], sizes = [4, 21], strides = [1, 1]} : vector<4x22xf32> to vector<4x21xf32>
    %cst_5 = arith.constant dense<0.000000e+00> : vector<8x21xf32>
    %7 = tpu.matmul %5, %6, %cst_5 {dimension_numbers = #tpu.dot_dimension_numbers<[1], [0], [0], [1], [0, 0, 1, 1], [], []>} : vector<8x4xf32>, vector<4x21xf32>, vector<8x21xf32> -> vector<8x21xf32>
    %8 = arith.addf %4, %7 : vector<8x21xf32>
    %c0_6 = arith.constant 0 : index
    %c4 = arith.constant 4 : index
    %9 = vector.load %arg3[%c0_6, %c4] : memref<8x8xf32, #tpu.memory_space<vmem>>, vector<8x4xf32>
    %10 = vector.extract_strided_slice %3 {offsets = [0, 1], sizes = [4, 21], strides = [1, 1]} : vector<4x22xf32> to vector<4x21xf32>
    %cst_7 = arith.constant dense<0.000000e+00> : vector<8x21xf32>
    %11 = tpu.matmul %9, %10, %cst_7 {dimension_numbers = #tpu.dot_dimension_numbers<[1], [0], [0], [1], [0, 0, 1, 1], [], []>} : vector<8x4xf32>, vector<4x21xf32>, vector<8x21xf32> -> vector<8x21xf32>
    %12 = arith.addf %8, %11 : vector<8x21xf32>
    %c0_8 = arith.constant 0 : index
    %c0_9 = arith.constant 0 : index
    %13 = vector.load %arg4[%c0_8, %c0_9] : memref<8x1xf32, #tpu.memory_space<vmem>>, vector<8x1xf32>
    %14 = vector.broadcast %13 : vector<8x1xf32> to vector<8x21xf32>
    %15 = arith.addf %12, %14 : vector<8x21xf32>
    %cst_10 = arith.constant 0.000000e+00 : f32
    %16 = vector.broadcast %cst_10 : f32 to vector<8x21xf32>
    %17 = arith.maximumf %15, %16 : vector<8x21xf32>
    %18 = tpu.iota {dimensions = array<i32: 1>} : vector<8x21xi32>
    %c5_i32 = arith.constant 5 : i32
    %19 = vector.broadcast %c5_i32 : i32 to vector<8x21xi32>
    %20 = arith.cmpi sge, %18, %19 : vector<8x21xi32>
    %cst_11 = arith.constant 0.000000e+00 : f32
    %21 = vector.broadcast %cst_11 : f32 to vector<8x21xf32>
    %22 = arith.select %20, %17, %21 : vector<8x21xi1>, vector<8x21xf32>
    %23 = vector.extract_strided_slice %22 {offsets = [0, 0], sizes = [8, 20], strides = [1, 1]} : vector<8x21xf32> to vector<8x20xf32>
    %24 = vector.extract_strided_slice %22 {offsets = [0, 1], sizes = [8, 20], strides = [1, 1]} : vector<8x21xf32> to vector<8x20xf32>
    %25 = tpu.concatenate %23, %24 in 0 : vector<8x20xf32>, vector<8x20xf32> -> vector<16x20xf32>
    %c0_12 = arith.constant 0 : index
    %c0_13 = arith.constant 0 : index
    %26 = vector.load %arg5[%c0_12, %c0_13] : memref<8x16xf32, #tpu.memory_space<vmem>>, vector<8x16xf32>
    %cst_14 = arith.constant dense<0.000000e+00> : vector<8x20xf32>
    %27 = tpu.matmul %26, %25, %cst_14 {dimension_numbers = #tpu.dot_dimension_numbers<[1], [0], [0], [1], [0, 0, 1, 1], [], []>} : vector<8x16xf32>, vector<16x20xf32>, vector<8x20xf32> -> vector<8x20xf32>
    %c0_15 = arith.constant 0 : index
    %c0_16 = arith.constant 0 : index
    %28 = vector.load %arg6[%c0_15, %c0_16] : memref<8x1xf32, #tpu.memory_space<vmem>>, vector<8x1xf32>
    %29 = vector.broadcast %28 : vector<8x1xf32> to vector<8x20xf32>
    %30 = arith.addf %27, %29 : vector<8x20xf32>
    %cst_17 = arith.constant 0.000000e+00 : f32
    %31 = vector.broadcast %cst_17 : f32 to vector<8x20xf32>
    %32 = arith.maximumf %30, %31 : vector<8x20xf32>
    %33 = vector.extract_strided_slice %3 {offsets = [0, 2], sizes = [4, 20], strides = [1, 1]} : vector<4x22xf32> to vector<4x20xf32>
    %c0_18 = arith.constant 0 : index
    %c0_19 = arith.constant 0 : index
    %34 = vector.load %arg7[%c0_18, %c0_19] : memref<8x4xf32, #tpu.memory_space<vmem>>, vector<8x4xf32>
    %cst_20 = arith.constant dense<0.000000e+00> : vector<8x20xf32>
    %35 = tpu.matmul %34, %33, %cst_20 {dimension_numbers = #tpu.dot_dimension_numbers<[1], [0], [0], [1], [0, 0, 1, 1], [], []>} : vector<8x4xf32>, vector<4x20xf32>, vector<8x20xf32> -> vector<8x20xf32>
    %c0_21 = arith.constant 0 : index
    %c0_22 = arith.constant 0 : index
    %36 = vector.load %arg8[%c0_21, %c0_22] : memref<8x1xf32, #tpu.memory_space<vmem>>, vector<8x1xf32>
    %37 = vector.broadcast %36 : vector<8x1xf32> to vector<8x20xf32>
    %38 = arith.addf %35, %37 : vector<8x20xf32>
    %39 = arith.addf %32, %38 : vector<8x20xf32>
    %cst_23 = arith.constant 0.000000e+00 : f32
    %40 = vector.broadcast %cst_23 : f32 to vector<8x20xf32>
    %41 = arith.maximumf %39, %40 : vector<8x20xf32>
    %42 = tpu.iota {dimensions = array<i32: 1>} : vector<8x20xi32>
    %c4_i32 = arith.constant 4 : i32
    %43 = vector.broadcast %c4_i32 : i32 to vector<8x20xi32>
    %44 = arith.cmpi sge, %42, %43 : vector<8x20xi32>
    %cst_24 = arith.constant 0.000000e+00 : f32
    %45 = vector.broadcast %cst_24 : f32 to vector<8x20xf32>
    %46 = arith.select %44, %41, %45 : vector<8x20xi1>, vector<8x20xf32>
    %47 = vector.extract_strided_slice %46 {offsets = [0, 0], sizes = [8, 18], strides = [1, 1]} : vector<8x20xf32> to vector<8x18xf32>
    %48 = vector.extract_strided_slice %46 {offsets = [0, 2], sizes = [8, 18], strides = [1, 1]} : vector<8x20xf32> to vector<8x18xf32>
    %49 = tpu.concatenate %47, %48 in 0 : vector<8x18xf32>, vector<8x18xf32> -> vector<16x18xf32>
    %c0_25 = arith.constant 0 : index
    %c0_26 = arith.constant 0 : index
    %50 = vector.load %arg9[%c0_25, %c0_26] : memref<8x16xf32, #tpu.memory_space<vmem>>, vector<8x16xf32>
    %cst_27 = arith.constant dense<0.000000e+00> : vector<8x18xf32>
    %51 = tpu.matmul %50, %49, %cst_27 {dimension_numbers = #tpu.dot_dimension_numbers<[1], [0], [0], [1], [0, 0, 1, 1], [], []>} : vector<8x16xf32>, vector<16x18xf32>, vector<8x18xf32> -> vector<8x18xf32>
    %c0_28 = arith.constant 0 : index
    %c0_29 = arith.constant 0 : index
    %52 = vector.load %arg10[%c0_28, %c0_29] : memref<8x1xf32, #tpu.memory_space<vmem>>, vector<8x1xf32>
    %53 = vector.broadcast %52 : vector<8x1xf32> to vector<8x18xf32>
    %54 = arith.addf %51, %53 : vector<8x18xf32>
    %cst_30 = arith.constant 0.000000e+00 : f32
    %55 = vector.broadcast %cst_30 : f32 to vector<8x18xf32>
    %56 = arith.maximumf %54, %55 : vector<8x18xf32>
    %57 = tpu.iota {dimensions = array<i32: 1>} : vector<8x18xi32>
    %c2_i32 = arith.constant 2 : i32
    %58 = vector.broadcast %c2_i32 : i32 to vector<8x18xi32>
    %59 = arith.cmpi sge, %57, %58 : vector<8x18xi32>
    %cst_31 = arith.constant 0.000000e+00 : f32
    %60 = vector.broadcast %cst_31 : f32 to vector<8x18xf32>
    %61 = arith.select %59, %56, %60 : vector<8x18xi1>, vector<8x18xf32>
    %62 = vector.extract_strided_slice %61 {offsets = [0, 0], sizes = [8, 16], strides = [1, 1]} : vector<8x18xf32> to vector<8x16xf32>
    %63 = vector.extract_strided_slice %61 {offsets = [0, 2], sizes = [8, 16], strides = [1, 1]} : vector<8x18xf32> to vector<8x16xf32>
    %64 = tpu.concatenate %62, %63 in 0 : vector<8x16xf32>, vector<8x16xf32> -> vector<16x16xf32>
    %c0_32 = arith.constant 0 : index
    %c0_33 = arith.constant 0 : index
    %65 = vector.load %arg11[%c0_32, %c0_33] : memref<8x16xf32, #tpu.memory_space<vmem>>, vector<8x16xf32>
    %cst_34 = arith.constant dense<0.000000e+00> : vector<8x16xf32>
    %66 = tpu.matmul %65, %64, %cst_34 {dimension_numbers = #tpu.dot_dimension_numbers<[1], [0], [0], [1], [0, 0, 1, 1], [], []>} : vector<8x16xf32>, vector<16x16xf32>, vector<8x16xf32> -> vector<8x16xf32>
    %c0_35 = arith.constant 0 : index
    %c0_36 = arith.constant 0 : index
    %67 = vector.load %arg12[%c0_35, %c0_36] : memref<8x1xf32, #tpu.memory_space<vmem>>, vector<8x1xf32>
    %68 = vector.broadcast %67 : vector<8x1xf32> to vector<8x16xf32>
    %69 = arith.addf %66, %68 : vector<8x16xf32>
    %cst_37 = arith.constant 0.000000e+00 : f32
    %70 = vector.broadcast %cst_37 : f32 to vector<8x16xf32>
    %71 = arith.maximumf %69, %70 : vector<8x16xf32>
    %72 = vector.extract_strided_slice %46 {offsets = [0, 4], sizes = [8, 16], strides = [1, 1]} : vector<8x20xf32> to vector<8x16xf32>
    %73 = arith.addf %71, %72 : vector<8x16xf32>
    %cst_38 = arith.constant 0.000000e+00 : f32
    %74 = vector.broadcast %cst_38 : f32 to vector<8x16xf32>
    %75 = arith.maximumf %73, %74 : vector<8x16xf32>
    %c0_39 = arith.constant 0 : index
    %c0_40 = arith.constant 0 : index
    %c0_41 = arith.constant 0 : index
    %76 = vector.load %arg13[%c0_39, %c0_40, %c0_41] : memref<1x8x16xf32, #tpu.memory_space<vmem>>, vector<1x8x16xf32>
    %77 = vector.shape_cast %76 : vector<1x8x16xf32> to vector<8x16xf32>
    %78 = vector.shape_cast %75 : vector<8x16xf32> to vector<1x8x16xf32>
    tpu.vector_store %arg13[%c0_39, %c0_40, %c0_41], %78 {strides = array<i32>} : memref<1x8x16xf32, #tpu.memory_space<vmem>>, vector<1x8x16xf32>,
    return
  }
  func.func @transform_0(%arg0: i32, %arg1: i32) -> (i32, i32, i32) {
    %c0_i32 = arith.constant 0 : i32
    %c0_i32_0 = arith.constant 0 : i32
    return %arg0, %c0_i32, %arg1 : i32, i32, i32
  }
  func.func @transform_1(%arg0: i32, %arg1: i32) -> (i32, i32) {
    %c0_i32 = arith.constant 0 : i32
    %c0_i32_0 = arith.constant 0 : i32
    %c0_i32_1 = arith.constant 0 : i32
    return %c0_i32, %c0_i32_0 : i32, i32
  }
  func.func @transform_2(%arg0: i32, %arg1: i32) -> (i32, i32) {
    %c0_i32 = arith.constant 0 : i32
    %c0_i32_0 = arith.constant 0 : i32
    %c0_i32_1 = arith.constant 0 : i32
    return %c0_i32, %c0_i32_0 : i32, i32
  }
  func.func @transform_3(%arg0: i32, %arg1: i32) -> (i32, i32) {
    %c0_i32 = arith.constant 0 : i32
    %c0_i32_0 = arith.constant 0 : i32
    %c0_i32_1 = arith.constant 0 : i32
    return %c0_i32, %c0_i32_0 : i32, i32
  }
  func.func @transform_4(%arg0: i32, %arg1: i32) -> (i32, i32) {
    %c0_i32 = arith.constant 0 : i32
    %c0_i32_0 = arith.constant 0 : i32
    %c0_i32_1 = arith.constant 0 : i32
    return %c0_i32, %c0_i32_0 : i32, i32
  }
  func.func @transform_5(%arg0: i32, %arg1: i32) -> (i32, i32) {
    %c0_i32 = arith.constant 0 : i32
    %c0_i32_0 = arith.constant 0 : i32
    %c0_i32_1 = arith.constant 0 : i32
    return %c0_i32, %c0_i32_0 : i32, i32
  }
  func.func @transform_6(%arg0: i32, %arg1: i32) -> (i32, i32) {
    %c0_i32 = arith.constant 0 : i32
    %c0_i32_0 = arith.constant 0 : i32
    %c0_i32_1 = arith.constant 0 : i32
    return %c0_i32, %c0_i32_0 : i32, i32
  }
  func.func @transform_7(%arg0: i32, %arg1: i32) -> (i32, i32) {
    %c0_i32 = arith.constant 0 : i32
    %c0_i32_0 = arith.constant 0 : i32
    %c0_i32_1 = arith.constant 0 : i32
    return %c0_i32, %c0_i32_0 : i32, i32
  }
  func.func @transform_8(%arg0: i32, %arg1: i32) -> (i32, i32) {
    %c0_i32 = arith.constant 0 : i32
    %c0_i32_0 = arith.constant 0 : i32
    %c0_i32_1 = arith.constant 0 : i32
    return %c0_i32, %c0_i32_0 : i32, i32
  }
  func.func @transform_9(%arg0: i32, %arg1: i32) -> (i32, i32) {
    %c0_i32 = arith.constant 0 : i32
    %c0_i32_0 = arith.constant 0 : i32
    %c0_i32_1 = arith.constant 0 : i32
    return %c0_i32, %c0_i32_0 : i32, i32
  }
  func.func @transform_10(%arg0: i32, %arg1: i32) -> (i32, i32) {
    %c0_i32 = arith.constant 0 : i32
    %c0_i32_0 = arith.constant 0 : i32
    %c0_i32_1 = arith.constant 0 : i32
    return %c0_i32, %c0_i32_0 : i32, i32
  }
  func.func @transform_11(%arg0: i32, %arg1: i32) -> (i32, i32, i32) {
    %c0_i32 = arith.constant 0 : i32
    %c0_i32_0 = arith.constant 0 : i32
    return %arg0, %c0_i32, %arg1 : i32, i32, i32
  }
}

</mosaic_0001>

<llo_original>
// kernel: tpu_custom_call.1
$region0: #{tpu_custom_call.1}
  #allocation0 [shape = 'u32[]', space=smem, size = 0x4, offset = 0x4, fixed_abs, tag = 'smem constant byte address 0x4 - core index']
  #allocation1 [shape = 'u32[144,128]{1,0:T(1,128)}', space=vmem, size = 0x12000, scoped, tag = 'internal scratch']
  %s0 = inlined_call_operand.vmem [shape: f32[2,4,16], index: 0, kind: input, shape index: {}]
  %s1 = inlined_call_operand.vmem [shape: f32[8,8], index: 1, kind: input, shape index: {}]
  %s2 = inlined_call_operand.vmem [shape: f32[8,1], index: 2, kind: input, shape index: {}]
  %s3 = inlined_call_operand.vmem [shape: f32[8,16], index: 3, kind: input, shape index: {}]
  %s4 = inlined_call_operand.vmem [shape: f32[8,1], index: 4, kind: input, shape index: {}]
  %s5 = inlined_call_operand.vmem [shape: f32[8,4], index: 5, kind: input, shape index: {}]
  %s6 = inlined_call_operand.vmem [shape: f32[8,1], index: 6, kind: input, shape index: {}]
  %s7 = inlined_call_operand.vmem [shape: f32[8,16], index: 7, kind: input, shape index: {}]
  %s8 = inlined_call_operand.vmem [shape: f32[8,1], index: 8, kind: input, shape index: {}]
  %s9 = inlined_call_operand.vmem [shape: f32[8,16], index: 9, kind: input, shape index: {}]
  %s10 = inlined_call_operand.vmem [shape: f32[8,1], index: 10, kind: input, shape index: {}]
  %s11 = inlined_call_operand.hbm [shape: f32[2,8,16], index: 11, kind: output, shape index: {}]
  %s12 = sld [smem:[#allocation0]]
  $region77: #{tpu_custom_call.1} parent=0
    _
  %s14 = ssub.s32 1, %s12
  %s15 = scalar_select 0, %s14, %s12
  $region1: #{tpu_custom_call.1} parent=0
    #allocation2 [shape = 'u8[8192]{0}', space=vmem, size = 0x2000, scoped, tag = 'output window, operand 0']
    #allocation3 [shape = 's32[2]{0}', space=sflag, size = 0x8, scoped, tag = 'scoped memory for tpu_custom_call.1']
    %16 = vsyncpa [#allocation3], 0
    %s17 = scalar_lea.sflag [#allocation3], 1
    %18 = vsyncpa %s17, 0
    loop: start=0, step=1, limit=4
    $region2: #{tpu_custom_call.1} parent=1 // loop_pre_header
      _
    $region3: #{tpu_custom_call.1} parent=1 // loop_header
      %s20 = sphi 0, %s24
      %p21 = scmp.ge.s32.totalorder %s20, 4
      %s27 = sphi 0, %s39
      %s28 = sphi 0, %s35
      %s29 = sphi 0, %s27
      %s30 = sphi 0, %s28
      %s31 = sphi 0, %s29
      %s32 = sphi 0, %s30
      %s44 = sphi 0, %s46
      %s47 = sphi 0, %s44
      %s48 = sphi 0, %s47
      %s64 = sphi 0, %s48
      %s68 = sphi 0, %s68
      %s70 = sphi 0, %s68
      %s71 = sphi 0, %s70
      %s85 = sphi 0, %s71
      %s89 = sphi 0, %s89
      %s91 = sphi 0, %s89
      %s92 = sphi 0, %s91
      %s106 = sphi 0, %s92
      %s110 = sphi 0, %s110
      %s112 = sphi 0, %s110
      %s113 = sphi 0, %s112
      %s127 = sphi 0, %s113
      %s131 = sphi 0, %s131
      %s133 = sphi 0, %s131
      %s134 = sphi 0, %s133
      %s148 = sphi 0, %s134
      %s152 = sphi 0, %s152
      %s154 = sphi 0, %s152
      %s155 = sphi 0, %s154
      %s169 = sphi 0, %s155
      %s173 = sphi 0, %s173
      %s175 = sphi 0, %s173
      %s176 = sphi 0, %s175
      %s190 = sphi 0, %s176
      %s194 = sphi 0, %s194
      %s196 = sphi 0, %s194
      %s197 = sphi 0, %s196
      %s211 = sphi 0, %s197
      %s215 = sphi 0, %s215
      %s217 = sphi 0, %s215
      %s218 = sphi 0, %s217
      %s232 = sphi 0, %s218
      %s236 = sphi 0, %s236
      %s238 = sphi 0, %s236
      %s239 = sphi 0, %s238
      %s253 = sphi 0, %s239
      %s257 = sphi 0, %s257
      %s259 = sphi 0, %s257
      %s260 = sphi 0, %s259
      %s274 = sphi 0, %s260
      %s282 = sphi 0, %s284
      %s285 = sphi 0, %s282
      %s286 = sphi 0, %s285
      %s302 = sphi 0, %s286
    $region4: #{tpu_custom_call.1} parent=1 // loop_header_branch
      %23 = sbr.rel (%p21) target = $region8
    $region5: #{tpu_custom_call.1} parent=1 // loop_body
      %s25 = ssub.s32 %s20, 1
      %s26 = ssub.s32 %s20, 2
      %s33 = sadd.s32 1, %s28
      %p34 = scmp.ge.s32.totalorder %s33, 1
      %s35 = scalar_select %p34, 0, %s33
      %s36 = sadd.s32 1, %s27
      %s37 = scalar_select %p34, %s36, %s27
      %p38 = scmp.ge.s32.totalorder %s37, 2
      %s39 = scalar_select %p38, 0, %s37
      %s40 = ssub.s32 %s27, %s39
      %s41 = ssub.s32 %s28, %s35
      %s42 = sor.u32 %s40, %s41
      %p43 = scmp.eq.s32.totalorder %s42, 0
      %s45 = sadd.s32 %s44, 1
      %s46 = scalar_select %p43, %s44, %s45
      %p49 = pneg %p43
      %p50 = scmp.eq.s32.totalorder %s20, 1
      %p51 = por %p49, %p50
      %p52 = scmp.ne.s32.totalorder %s44, %s47
      %p53 = scmp.eq.s32.totalorder %s20, 0
      %p54 = por %p52, %p53
      %p55 = scmp.ne.s32.totalorder %s44, %s47
      %p56 = scmp.eq.s32.totalorder %s25, 1
      %p57 = por %p55, %p56
      %p58 = scmp.ne.s32.totalorder %s47, %s48
      %p59 = scmp.eq.s32.totalorder %s25, 0
      %p60 = por %p58, %p59
      %p61 = scmp.ne.s32.totalorder %s47, %s48
      %p62 = scmp.eq.s32.totalorder %s26, 1
      %p63 = por %p61, %p62
      %p65 = scmp.ne.s32.totalorder %s48, %s64
      %p66 = scmp.eq.s32.totalorder %s26, 0
      %p67 = por %p65, %p66
      %s69 = sadd.s32 %s68, 1
      %p72 = scmp.eq.s32.totalorder %s20, 1
      %p73 = scmp.ne.s32.totalorder %s68, %s70
      %p74 = scmp.eq.s32.totalorder %s20, 0
      %p75 = por %p73, %p74
      %p76 = scmp.ne.s32.totalorder %s68, %s70
      %p77 = scmp.eq.s32.totalorder %s25, 1
      %p78 = por %p76, %p77
      %p79 = scmp.ne.s32.totalorder %s70, %s71
      %p80 = scmp.eq.s32.totalorder %s25, 0
      %p81 = por %p79, %p80
      %p82 = scmp.ne.s32.totalorder %s70, %s71
      %p83 = scmp.eq.s32.totalorder %s26, 1
      %p84 = por %p82, %p83
      %p86 = scmp.ne.s32.totalorder %s71, %s85
      %p87 = scmp.eq.s32.totalorder %s26, 0
      %p88 = por %p86, %p87
      %s90 = sadd.s32 %s89, 1
      %p93 = scmp.eq.s32.totalorder %s20, 1
      %p94 = scmp.ne.s32.totalorder %s89, %s91
      %p95 = scmp.eq.s32.totalorder %s20, 0
      %p96 = por %p94, %p95
      %p97 = scmp.ne.s32.totalorder %s89, %s91
      %p98 = scmp.eq.s32.totalorder %s25, 1
      %p99 = por %p97, %p98
      %p100 = scmp.ne.s32.totalorder %s91, %s92
      %p101 = scmp.eq.s32.totalorder %s25, 0
      %p102 = por %p100, %p101
      %p103 = scmp.ne.s32.totalorder %s91, %s92
      %p104 = scmp.eq.s32.totalorder %s26, 1
      %p105 = por %p103, %p104
      %p107 = scmp.ne.s32.totalorder %s92, %s106
      %p108 = scmp.eq.s32.totalorder %s26, 0
      %p109 = por %p107, %p108
      %s111 = sadd.s32 %s110, 1
      %p114 = scmp.eq.s32.totalorder %s20, 1
      %p115 = scmp.ne.s32.totalorder %s110, %s112
      %p116 = scmp.eq.s32.totalorder %s20, 0
      %p117 = por %p115, %p116
      %p118 = scmp.ne.s32.totalorder %s110, %s112
      %p119 = scmp.eq.s32.totalorder %s25, 1
      %p120 = por %p118, %p119
      %p121 = scmp.ne.s32.totalorder %s112, %s113
      %p122 = scmp.eq.s32.totalorder %s25, 0
      %p123 = por %p121, %p122
      %p124 = scmp.ne.s32.totalorder %s112, %s113
      %p125 = scmp.eq.s32.totalorder %s26, 1
      %p126 = por %p124, %p125
      %p128 = scmp.ne.s32.totalorder %s113, %s127
      %p129 = scmp.eq.s32.totalorder %s26, 0
      %p130 = por %p128, %p129
      %s132 = sadd.s32 %s131, 1
      %p135 = scmp.eq.s32.totalorder %s20, 1
      %p136 = scmp.ne.s32.totalorder %s131, %s133
      %p137 = scmp.eq.s32.totalorder %s20, 0
      %p138 = por %p136, %p137
      %p139 = scmp.ne.s32.totalorder %s131, %s133
      %p140 = scmp.eq.s32.totalorder %s25, 1
      %p141 = por %p139, %p140
      %p142 = scmp.ne.s32.totalorder %s133, %s134
      %p143 = scmp.eq.s32.totalorder %s25, 0
      %p144 = por %p142, %p143
      %p145 = scmp.ne.s32.totalorder %s133, %s134
      %p146 = scmp.eq.s32.totalorder %s26, 1
      %p147 = por %p145, %p146
      %p149 = scmp.ne.s32.totalorder %s134, %s148
      %p150 = scmp.eq.s32.totalorder %s26, 0
      %p151 = por %p149, %p150
      %s153 = sadd.s32 %s152, 1
      %p156 = scmp.eq.s32.totalorder %s20, 1
      %p157 = scmp.ne.s32.totalorder %s152, %s154
      %p158 = scmp.eq.s32.totalorder %s20, 0
      %p159 = por %p157, %p158
      %p160 = scmp.ne.s32.totalorder %s152, %s154
      %p161 = scmp.eq.s32.totalorder %s25, 1
      %p162 = por %p160, %p161
      %p163 = scmp.ne.s32.totalorder %s154, %s155
      %p164 = scmp.eq.s32.totalorder %s25, 0
      %p165 = por %p163, %p164
      %p166 = scmp.ne.s32.totalorder %s154, %s155
      %p167 = scmp.eq.s32.totalorder %s26, 1
      %p168 = por %p166, %p167
      %p170 = scmp.ne.s32.totalorder %s155, %s169
      %p171 = scmp.eq.s32.totalorder %s26, 0
      %p172 = por %p170, %p171
      %s174 = sadd.s32 %s173, 1
      %p177 = scmp.eq.s32.totalorder %s20, 1
      %p178 = scmp.ne.s32.totalorder %s173, %s175
      %p179 = scmp.eq.s32.totalorder %s20, 0
      %p180 = por %p178, %p179
      %p181 = scmp.ne.s32.totalorder %s173, %s175
      %p182 = scmp.eq.s32.totalorder %s25, 1
      %p183 = por %p181, %p182
      %p184 = scmp.ne.s32.totalorder %s175, %s176
      %p185 = scmp.eq.s32.totalorder %s25, 0
      %p186 = por %p184, %p185
      %p187 = scmp.ne.s32.totalorder %s175, %s176
      %p188 = scmp.eq.s32.totalorder %s26, 1
      %p189 = por %p187, %p188
      %p191 = scmp.ne.s32.totalorder %s176, %s190
      %p192 = scmp.eq.s32.totalorder %s26, 0
      %p193 = por %p191, %p192
      %s195 = sadd.s32 %s194, 1
      %p198 = scmp.eq.s32.totalorder %s20, 1
      %p199 = scmp.ne.s32.totalorder %s194, %s196
      %p200 = scmp.eq.s32.totalorder %s20, 0
      %p201 = por %p199, %p200
      %p202 = scmp.ne.s32.totalorder %s194, %s196
      %p203 = scmp.eq.s32.totalorder %s25, 1
      %p204 = por %p202, %p203
      %p205 = scmp.ne.s32.totalorder %s196, %s197
      %p206 = scmp.eq.s32.totalorder %s25, 0
      %p207 = por %p205, %p206
      %p208 = scmp.ne.s32.totalorder %s196, %s197
      %p209 = scmp.eq.s32.totalorder %s26, 1
      %p210 = por %p208, %p209
      %p212 = scmp.ne.s32.totalorder %s197, %s211
      %p213 = scmp.eq.s32.totalorder %s26, 0
      %p214 = por %p212, %p213
      %s216 = sadd.s32 %s215, 1
      %p219 = scmp.eq.s32.totalorder %s20, 1
      %p220 = scmp.ne.s32.totalorder %s215, %s217
      %p221 = scmp.eq.s32.totalorder %s20, 0
      %p222 = por %p220, %p221
      %p223 = scmp.ne.s32.totalorder %s215, %s217
      %p224 = scmp.eq.s32.totalorder %s25, 1
      %p225 = por %p223, %p224
      %p226 = scmp.ne.s32.totalorder %s217, %s218
      %p227 = scmp.eq.s32.totalorder %s25, 0
      %p228 = por %p226, %p227
      %p229 = scmp.ne.s32.totalorder %s217, %s218
      %p230 = scmp.eq.s32.totalorder %s26, 1
      %p231 = por %p229, %p230
      %p233 = scmp.ne.s32.totalorder %s218, %s232
      %p234 = scmp.eq.s32.totalorder %s26, 0
      %p235 = por %p233, %p234
      %s237 = sadd.s32 %s236, 1
      %p240 = scmp.eq.s32.totalorder %s20, 1
      %p241 = scmp.ne.s32.totalorder %s236, %s238
      %p242 = scmp.eq.s32.totalorder %s20, 0
      %p243 = por %p241, %p242
      %p244 = scmp.ne.s32.totalorder %s236, %s238
      %p245 = scmp.eq.s32.totalorder %s25, 1
      %p246 = por %p244, %p245
      %p247 = scmp.ne.s32.totalorder %s238, %s239
      %p248 = scmp.eq.s32.totalorder %s25, 0
      %p249 = por %p247, %p248
      %p250 = scmp.ne.s32.totalorder %s238, %s239
      %p251 = scmp.eq.s32.totalorder %s26, 1
      %p252 = por %p250, %p251
      %p254 = scmp.ne.s32.totalorder %s239, %s253
      %p255 = scmp.eq.s32.totalorder %s26, 0
      %p256 = por %p254, %p255
      %s258 = sadd.s32 %s257, 1
      %p261 = scmp.eq.s32.totalorder %s20, 1
      %p262 = scmp.ne.s32.totalorder %s257, %s259
      %p263 = scmp.eq.s32.totalorder %s20, 0
      %p264 = por %p262, %p263
      %p265 = scmp.ne.s32.totalorder %s257, %s259
      %p266 = scmp.eq.s32.totalorder %s25, 1
      %p267 = por %p265, %p266
      %p268 = scmp.ne.s32.totalorder %s259, %s260
      %p269 = scmp.eq.s32.totalorder %s25, 0
      %p270 = por %p268, %p269
      %p271 = scmp.ne.s32.totalorder %s259, %s260
      %p272 = scmp.eq.s32.totalorder %s26, 1
      %p273 = por %p271, %p272
      %p275 = scmp.ne.s32.totalorder %s260, %s274
      %p276 = scmp.eq.s32.totalorder %s26, 0
      %p277 = por %p275, %p276
      %s278 = ssub.s32 %s27, %s39
      %s279 = ssub.s32 %s28, %s35
      %s280 = sor.u32 %s278, %s279
      %p281 = scmp.eq.s32.totalorder %s280, 0
      %s283 = sadd.s32 %s282, 1
      %s284 = scalar_select %p281, %s282, %s283
      %p287 = pneg %p281
      %p288 = scmp.eq.s32.totalorder %s20, 1
      %p289 = por %p287, %p288
      %p290 = scmp.ne.s32.totalorder %s282, %s285
      %p291 = scmp.eq.s32.totalorder %s20, 0
      %p292 = por %p290, %p291
      %p293 = scmp.ne.s32.totalorder %s282, %s285
      %p294 = scmp.eq.s32.totalorder %s25, 1
      %p295 = por %p293, %p294
      %p296 = scmp.ne.s32.totalorder %s285, %s286
      %p297 = scmp.eq.s32.totalorder %s25, 0
      %p298 = por %p296, %p297
      %p299 = scmp.ne.s32.totalorder %s285, %s286
      %p300 = scmp.eq.s32.totalorder %s26, 1
      %p301 = por %p299, %p300
      %p303 = scmp.ne.s32.totalorder %s286, %s302
      %p304 = scmp.eq.s32.totalorder %s26, 0
      %p305 = por %p303, %p304
      %p306 = scmp.le.s32.totalorder 1, %s20
      %p307 = scmp.lt.s32.totalorder %s20, 3
      %p308 = pnand %p306, %p307
      %p309 = pneg %p308
      // Predicated region
      $region9: #{tpu_custom_call.1} parent=5 // pred_check
        _
      $region10: #{tpu_custom_call.1} parent=5 // pred_check_branch
        %311 = sbr.rel (%p308) target = $region12
      $region11: #{tpu_custom_call.1} parent=5 // pred_region
        %s312 = ssub.s32 %s20, 1
        // Predicated region
        $region13: #{tpu_custom_call.1} parent=11 // pred_check
          %p313 = pneg %p81
        $region14: #{tpu_custom_call.1} parent=11 // pred_check_branch
          %315 = sbr.rel (%p313) target = $region16
        $region15: #{tpu_custom_call.1} parent=11 // pred_region
          _
        $region16: #{tpu_custom_call.1} parent=11 // pred_fallthru
          _
        // Predicated region
        $region17: #{tpu_custom_call.1} parent=11 // pred_check
          %p316 = pneg %p102
        $region18: #{tpu_custom_call.1} parent=11 // pred_check_branch
          %318 = sbr.rel (%p316) target = $region20
        $region19: #{tpu_custom_call.1} parent=11 // pred_region
          _
        $region20: #{tpu_custom_call.1} parent=11 // pred_fallthru
          _
        // Predicated region
        $region21: #{tpu_custom_call.1} parent=11 // pred_check
          %p319 = pneg %p123
        $region22: #{tpu_custom_call.1} parent=11 // pred_check_branch
          %321 = sbr.rel (%p319) target = $region24
        $region23: #{tpu_custom_call.1} parent=11 // pred_region
          _
        $region24: #{tpu_custom_call.1} parent=11 // pred_fallthru
          _
        // Predicated region
        $region25: #{tpu_custom_call.1} parent=11 // pred_check
          %p322 = pneg %p144
        $region26: #{tpu_custom_call.1} parent=11 // pred_check_branch
          %324 = sbr.rel (%p322) target = $region28
        $region27: #{tpu_custom_call.1} parent=11 // pred_region
          _
        $region28: #{tpu_custom_call.1} parent=11 // pred_fallthru
          _
        // Predicated region
        $region29: #{tpu_custom_call.1} parent=11 // pred_check
          %p325 = pneg %p165
        $region30: #{tpu_custom_call.1} parent=11 // pred_check_branch
          %327 = sbr.rel (%p325) target = $region32
        $region31: #{tpu_custom_call.1} parent=11 // pred_region
          _
        $region32: #{tpu_custom_call.1} parent=11 // pred_fallthru
          _
        // Predicated region
        $region33: #{tpu_custom_call.1} parent=11 // pred_check
          %p328 = pneg %p186
        $region34: #{tpu_custom_call.1} parent=11 // pred_check_branch
          %330 = sbr.rel (%p328) target = $region36
        $region35: #{tpu_custom_call.1} parent=11 // pred_region
          _
        $region36: #{tpu_custom_call.1} parent=11 // pred_fallthru
          _
        // Predicated region
        $region37: #{tpu_custom_call.1} parent=11 // pred_check
          %p331 = pneg %p207
        $region38: #{tpu_custom_call.1} parent=11 // pred_check_branch
          %333 = sbr.rel (%p331) target = $region40
        $region39: #{tpu_custom_call.1} parent=11 // pred_region
          _
        $region40: #{tpu_custom_call.1} parent=11 // pred_fallthru
          _
        // Predicated region
        $region41: #{tpu_custom_call.1} parent=11 // pred_check
          %p334 = pneg %p228
        $region42: #{tpu_custom_call.1} parent=11 // pred_check_branch
          %336 = sbr.rel (%p334) target = $region44
        $region43: #{tpu_custom_call.1} parent=11 // pred_region
          _
        $region44: #{tpu_custom_call.1} parent=11 // pred_fallthru
          _
        // Predicated region
        $region45: #{tpu_custom_call.1} parent=11 // pred_check
          %p337 = pneg %p249
        $region46: #{tpu_custom_call.1} parent=11 // pred_check_branch
          %339 = sbr.rel (%p337) target = $region48
        $region47: #{tpu_custom_call.1} parent=11 // pred_region
          _
        $region48: #{tpu_custom_call.1} parent=11 // pred_fallthru
          _
        // Predicated region
        $region49: #{tpu_custom_call.1} parent=11 // pred_check
          %p340 = pneg %p270
        $region50: #{tpu_custom_call.1} parent=11 // pred_check_branch
          %342 = sbr.rel (%p340) target = $region52
        $region51: #{tpu_custom_call.1} parent=11 // pred_region
          _
        $region52: #{tpu_custom_call.1} parent=11 // pred_fallthru
          _
      $region12: #{tpu_custom_call.1} parent=5 // pred_fallthru
        _
      %p343 = scmp.lt.s32.totalorder %s20, 2
      // Predicated region
      $region53: #{tpu_custom_call.1} parent=5 // pred_check
        %p344 = pneg %p343
      $region54: #{tpu_custom_call.1} parent=5 // pred_check_branch
        %346 = sbr.rel (%p344) target = $region56
      $region55: #{tpu_custom_call.1} parent=5 // pred_region
        // Predicated region
        $region57: #{tpu_custom_call.1} parent=55 // pred_check
          %p347 = pneg %p54
        $region58: #{tpu_custom_call.1} parent=55 // pred_check_branch
          %349 = sbr.rel (%p347) target = $region60
        $region59: #{tpu_custom_call.1} parent=55 // pred_region
          %p350 = scmp.lt.s32.totalorder %s27, 1
          %s351 = scalar_select %p350, %s27, 1
          %p352 = scmp.lt.s32.totalorder %s28, 0
          %s353 = scalar_select %p352, %s28, 0
          %s354 = sadd.s32 %s353, %s351
          %s355 = smul.addr %s354, 4
          %s356 = scalar_lea.vmem %s0, %s355
        $region60: #{tpu_custom_call.1} parent=55 // pred_fallthru
          _
      $region56: #{tpu_custom_call.1} parent=5 // pred_fallthru
        _
      %p357 = scmp.le.s32.totalorder 1, %s20
      %p358 = scmp.lt.s32.totalorder %s20, 3
      %p359 = pnand %p357, %p358
      %p360 = pneg %p359
      // Predicated region
      $region61: #{tpu_custom_call.1} parent=5 // pred_check
        _
      $region62: #{tpu_custom_call.1} parent=5 // pred_check_branch
        %362 = sbr.rel (%p359) target = $region64
      $region63: #{tpu_custom_call.1} parent=5 // pred_region
        %s363 = ssub.s32 %s20, 1
        %p364 = scmp.lt.s32.totalorder %s29, 1
        %s365 = scalar_select %p364, %s29, 1
        %p366 = scmp.lt.s32.totalorder %s30, 0
        %s367 = scalar_select %p366, %s30, 0
        %s368 = sadd.s32 %s367, %s365
        %s369 = smul.addr %s368, 4
        %s370 = scalar_lea.vmem %s0, %s369
        %p371 = pneg %p60
        %p372 = pneg %p57
        %p373 = pneg %p81
        %p374 = pneg %p78
        %p375 = pneg %p102
        %p376 = pneg %p99
        %p377 = pneg %p123
        %p378 = pneg %p120
        %p379 = pneg %p144
        %p380 = pneg %p141
        %p381 = pneg %p165
        %p382 = pneg %p162
        %p383 = pneg %p186
        %p384 = pneg %p183
        %p385 = pneg %p207
        %p386 = pneg %p204
        %p387 = pneg %p228
        %p388 = pneg %p225
        %p389 = pneg %p249
        %p390 = pneg %p246
        %p391 = pneg %p270
        %p392 = pneg %p267
        %p393 = pneg %p298
        %p394 = pneg %p295
        %s395 = sand.u32 %s285, 1
        %s396 = scalar_lea.sflag [#allocation3], %s395
        %s397 = sand.u32 %s285, 1
        %s398 = smul.addr %s397, 8
        %s399 = scalar_lea.vmem [#allocation2], %s398
        %p400 = scmp.lt.s32.totalorder %s29, 1
        %s401 = scalar_select %p400, %s29, 1
        %p402 = scmp.lt.s32.totalorder %s30, 0
        %s403 = scalar_select %p402, %s30, 0
        %s404 = sadd.s32 %s403, %s401
        %s405 = smul.addr %s404, 4
        %s406 = scalar_lea.vmem %s0, %s405
        %v407 = vld [vmem:[%s406] sm:$0xf]
        %409 = vrot.lane.b32.xlu0 %v407, 6
        %v410 = vpop.permute.xlu0 %409
        %vm412 = vcmask 48128
        %v413 = vsel %vm412, 0.0, %v410
        %v414 = vld [vmem:[%s1] sm:$0xff]
        %416 = vrot.lane.b32.xlu0 %v414, 124
        %v417 = vpop.permute.xlu0 %416
        %419 = vrot.lane.b32.xlu0 %v413, 127
        %v420 = vpop.permute.xlu0 %419
        %vm421 = vcmask 31744
        %v422 = vsel %vm421, %v417, 0
        %vm424 = vcmask 1043456
        %v425 = vsel %vm424, %v420, 0
        %427 = vmatprep.subr.mxu0 0.0
        %428 = vmatpush1.msra.mxu0 %v425
        %429 = vmatprep.subr.mxu0 0.0
        %430 = vmatpush1.msra.mxu0 0.0
        %431 = vmatprep.subr.mxu0 0.0
        %432 = vmatpush1.msra.mxu0 0.0
        %433 = vmatprep.subr.mxu0 0.0
        %434 = vmatpush1.msra.mxu0 0.0
        %435 = vmatprep.subr.mxu0 0.0
        %436 = vmatpush1.msra.mxu0 0.0
        %437 = vmatprep.subr.mxu0 0.0
        %438 = vmatpush1.msra.mxu0 0.0
        %439 = vmatprep.subr.mxu0 0.0
        %440 = vmatpush1.msra.mxu0 0.0
        %441 = vmatprep.subr.mxu0 0.0
        %442 = vmatpush1.msra.mxu0 0.0
        %443 = vmatprep.subr.mxu0 0.0
        %444 = vmatpush1.msra.mxu0 0.0
        %445 = vmatprep.subr.mxu0 0.0
        %446 = vmatpush1.msra.mxu0 0.0
        %447 = vmatprep.subr.mxu0 0.0
        %448 = vmatpush1.msra.mxu0 0.0
        %449 = vmatprep.subr.mxu0 0.0
        %450 = vmatpush1.msra.mxu0 0.0
        %451 = vmatprep.subr.mxu0 0.0
        %452 = vmatpush1.msra.mxu0 0.0
        %453 = vmatprep.subr.mxu0 0.0
        %454 = vmatpush1.msra.mxu0 0.0
        %455 = vmatprep.subr.mxu0 0.0
        %456 = vmatpush1.msra.mxu0 0.0
        %457 = vmatprep.subr.mxu0 0.0
        %458 = vmatpush1.msra.mxu0 0.0
        %459 = vmatprep.subr.mxu0 0.0
        %460 = vmatpush1.msra.mxu0 0.0
        %461 = vmatprep.subr.mxu0 0.0
        %462 = vmatpush1.msra.mxu0 0.0
        %463 = vmatprep.subr.mxu0 0.0
        %464 = vmatpush1.msra.mxu0 0.0
        %465 = vmatprep.subr.mxu0 0.0
        %466 = vmatpush1.msra.mxu0 0.0
        %467 = vmatprep.subr.mxu0 0.0
        %468 = vmatpush1.msra.mxu0 0.0
        %469 = vmatprep.subr.mxu0 0.0
        %470 = vmatpush1.msra.mxu0 0.0
        %471 = vmatprep.subr.mxu0 0.0
        %472 = vmatpush1.msra.mxu0 0.0
        %473 = vmatprep.subr.mxu0 0.0
        %474 = vmatpush1.msra.mxu0 0.0
        %475 = vmatprep.subr.mxu0 0.0
        %476 = vmatpush1.msra.mxu0 0.0
        %477 = vmatprep.subr.mxu0 0.0
        %478 = vmatpush1.msra.mxu0 0.0
        %479 = vmatprep.subr.mxu0 0.0
        %480 = vmatpush1.msra.mxu0 0.0
        %481 = vmatprep.subr.mxu0 0.0
        %482 = vmatpush1.msra.mxu0 0.0
        %483 = vmatprep.subr.mxu0 0.0
        %484 = vmatpush1.msra.mxu0 0.0
        %485 = vmatprep.subr.mxu0 0.0
        %486 = vmatpush1.msra.mxu0 0.0
        %487 = vmatprep.subr.mxu0 0.0
        %488 = vmatpush1.msra.mxu0 0.0
        %489 = vmatprep.subr.mxu0 0.0
        %490 = vmatpush1.msra.mxu0 0.0
        %491 = vmatprep.mubr.f32.mxu0 0.0
        %492 = vmatmul.mubr.f32.gmra.mrb[0].mxu0 %v422
        %v493 = vpop.f32.mrb[0].mxu0
        %v494 = vadd.f32 0.0, %v493
        %v495 = vpop.f32.mrb[0].mxu0
        %496 = vdwg.mxu0
        %v497 = vsel %vm421, %v414, 0
        %v499 = vsel %vm424, %v413, 0
        %501 = vmatprep.subr.mxu0 0.0
        %502 = vmatpush1.msra.mxu0 %v499
        %503 = vmatprep.subr.mxu0 0.0
        %504 = vmatpush1.msra.mxu0 0.0
        %505 = vmatprep.subr.mxu0 0.0
        %506 = vmatpush1.msra.mxu0 0.0
        %507 = vmatprep.subr.mxu0 0.0
        %508 = vmatpush1.msra.mxu0 0.0
        %509 = vmatprep.subr.mxu0 0.0
        %510 = vmatpush1.msra.mxu0 0.0
        %511 = vmatprep.subr.mxu0 0.0
        %512 = vmatpush1.msra.mxu0 0.0
        %513 = vmatprep.subr.mxu0 0.0
        %514 = vmatpush1.msra.mxu0 0.0
        %515 = vmatprep.subr.mxu0 0.0
        %516 = vmatpush1.msra.mxu0 0.0
        %517 = vmatprep.subr.mxu0 0.0
        %518 = vmatpush1.msra.mxu0 0.0
        %519 = vmatprep.subr.mxu0 0.0
        %520 = vmatpush1.msra.mxu0 0.0
        %521 = vmatprep.subr.mxu0 0.0
        %522 = vmatpush1.msra.mxu0 0.0
        %523 = vmatprep.subr.mxu0 0.0
        %524 = vmatpush1.msra.mxu0 0.0
        %525 = vmatprep.subr.mxu0 0.0
        %526 = vmatpush1.msra.mxu0 0.0
        %527 = vmatprep.subr.mxu0 0.0
        %528 = vmatpush1.msra.mxu0 0.0
        %529 = vmatprep.subr.mxu0 0.0
        %530 = vmatpush1.msra.mxu0 0.0
        %531 = vmatprep.subr.mxu0 0.0
        %532 = vmatpush1.msra.mxu0 0.0
        %533 = vmatprep.subr.mxu0 0.0
        %534 = vmatpush1.msra.mxu0 0.0
        %535 = vmatprep.subr.mxu0 0.0
        %536 = vmatpush1.msra.mxu0 0.0
        %537 = vmatprep.subr.mxu0 0.0
        %538 = vmatpush1.msra.mxu0 0.0
        %539 = vmatprep.subr.mxu0 0.0
        %540 = vmatpush1.msra.mxu0 0.0
        %541 = vmatprep.subr.mxu0 0.0
        %542 = vmatpush1.msra.mxu0 0.0
        %543 = vmatprep.subr.mxu0 0.0
        %544 = vmatpush1.msra.mxu0 0.0
        %545 = vmatprep.subr.mxu0 0.0
        %546 = vmatpush1.msra.mxu0 0.0
        %547 = vmatprep.subr.mxu0 0.0
        %548 = vmatpush1.msra.mxu0 0.0
        %549 = vmatprep.subr.mxu0 0.0
        %550 = vmatpush1.msra.mxu0 0.0
        %551 = vmatprep.subr.mxu0 0.0
        %552 = vmatpush1.msra.mxu0 0.0
        %553 = vmatprep.subr.mxu0 0.0
        %554 = vmatpush1.msra.mxu0 0.0
        %555 = vmatprep.subr.mxu0 0.0
        %556 = vmatpush1.msra.mxu0 0.0
        %557 = vmatprep.subr.mxu0 0.0
        %558 = vmatpush1.msra.mxu0 0.0
        %559 = vmatprep.subr.mxu0 0.0
        %560 = vmatpush1.msra.mxu0 0.0
        %561 = vmatprep.subr.mxu0 0.0
        %562 = vmatpush1.msra.mxu0 0.0
        %563 = vmatprep.subr.mxu0 0.0
        %564 = vmatpush1.msra.mxu0 0.0
        %565 = vmatprep.mubr.f32.mxu0 0.0
        %566 = vmatmul.mubr.f32.gmra.mrb[0].mxu0 %v497
        %v567 = vpop.f32.mrb[0].mxu0
        %v568 = vadd.f32 %v494, %v567
        %v569 = vpop.f32.mrb[0].mxu0
        %570 = vdwg.mxu0
        %v571 = vld [vmem:[%s2] sm:$0xff]
        %573 = vset.pattern.permute.xlu0 0
        %574 = vperm.xlu0 %573, %v571
        %v575 = vpop.permute.xlu0 %574
        %v577 = vadd.f32 %v568, %v575
        %v578 = vmax.f32 %v577, 0.0
        %v579 = vlaneseq
        %v580 = vand.u32 %v579, 127
        %vm581 = vcmp.ge.s32.totalorder %v580, 5
        %v582 = vsel %vm581, %v578, 0.0
        %584 = vrot.lane.b32.xlu0 %v582, 127
        %v585 = vpop.permute.xlu0 %584
        %v587 = vld [vmem:[%s3] sm:$0xff]
        %v588 = vld [vmem:[%s4] sm:$0xff]
        %590 = vset.pattern.permute.xlu0 0
        %591 = vperm.xlu0 %590, %v588
        %v592 = vpop.permute.xlu0 %591
        %vm594 = vcmask 130048
        %v596 = vsel %vm594, %v587, 0
        %598 = vmatprep.subr.mxu0 0.0
        %599 = vmatpush1.msra.mxu0 %v582
        %600 = vmatprep.subr.mxu0 0.0
        %601 = vmatpush1.msra.mxu0 %v585
        %602 = vmatprep.subr.mxu0 0.0
        %603 = vmatpush1.msra.mxu0 0.0
        %604 = vmatprep.subr.mxu0 0.0
        %605 = vmatpush1.msra.mxu0 0.0
        %606 = vmatprep.subr.mxu0 0.0
        %607 = vmatpush1.msra.mxu0 0.0
        %608 = vmatprep.subr.mxu0 0.0
        %609 = vmatpush1.msra.mxu0 0.0
        %610 = vmatprep.subr.mxu0 0.0
        %611 = vmatpush1.msra.mxu0 0.0
        %612 = vmatprep.subr.mxu0 0.0
        %613 = vmatpush1.msra.mxu0 0.0
        %614 = vmatprep.subr.mxu0 0.0
        %615 = vmatpush1.msra.mxu0 0.0
        %616 = vmatprep.subr.mxu0 0.0
        %617 = vmatpush1.msra.mxu0 0.0
        %618 = vmatprep.subr.mxu0 0.0
        %619 = vmatpush1.msra.mxu0 0.0
        %620 = vmatprep.subr.mxu0 0.0
        %621 = vmatpush1.msra.mxu0 0.0
        %622 = vmatprep.subr.mxu0 0.0
        %623 = vmatpush1.msra.mxu0 0.0
        %624 = vmatprep.subr.mxu0 0.0
        %625 = vmatpush1.msra.mxu0 0.0
        %626 = vmatprep.subr.mxu0 0.0
        %627 = vmatpush1.msra.mxu0 0.0
        %628 = vmatprep.subr.mxu0 0.0
        %629 = vmatpush1.msra.mxu0 0.0
        %630 = vmatprep.subr.mxu0 0.0
        %631 = vmatpush1.msra.mxu0 0.0
        %632 = vmatprep.subr.mxu0 0.0
        %633 = vmatpush1.msra.mxu0 0.0
        %634 = vmatprep.subr.mxu0 0.0
        %635 = vmatpush1.msra.mxu0 0.0
        %636 = vmatprep.subr.mxu0 0.0
        %637 = vmatpush1.msra.mxu0 0.0
        %638 = vmatprep.subr.mxu0 0.0
        %639 = vmatpush1.msra.mxu0 0.0
        %640 = vmatprep.subr.mxu0 0.0
        %641 = vmatpush1.msra.mxu0 0.0
        %642 = vmatprep.subr.mxu0 0.0
        %643 = vmatpush1.msra.mxu0 0.0
        %644 = vmatprep.subr.mxu0 0.0
        %645 = vmatpush1.msra.mxu0 0.0
        %646 = vmatprep.subr.mxu0 0.0
        %647 = vmatpush1.msra.mxu0 0.0
        %648 = vmatprep.subr.mxu0 0.0
        %649 = vmatpush1.msra.mxu0 0.0
        %650 = vmatprep.subr.mxu0 0.0
        %651 = vmatpush1.msra.mxu0 0.0
        %652 = vmatprep.subr.mxu0 0.0
        %653 = vmatpush1.msra.mxu0 0.0
        %654 = vmatprep.subr.mxu0 0.0
        %655 = vmatpush1.msra.mxu0 0.0
        %656 = vmatprep.subr.mxu0 0.0
        %657 = vmatpush1.msra.mxu0 0.0
        %658 = vmatprep.subr.mxu0 0.0
        %659 = vmatpush1.msra.mxu0 0.0
        %660 = vmatprep.subr.mxu0 0.0
        %661 = vmatpush1.msra.mxu0 0.0
        %662 = vmatprep.mubr.f32.mxu0 0.0
        %663 = vmatmul.mubr.f32.gmra.mrb[0].mxu0 %v596
        %v664 = vpop.f32.mrb[0].mxu0
        %v665 = vadd.f32 %v592, %v664
        %v666 = vpop.f32.mrb[0].mxu0
        %667 = vdwg.mxu0
        %v668 = vmax.f32 %v665, 0.0
        %v669 = vld [vmem:[%s5] sm:$0xff]
        %v670 = vld [vmem:[%s6] sm:$0xff]
        %672 = vset.pattern.permute.xlu0 0
        %673 = vperm.xlu0 %672, %v670
        %v674 = vpop.permute.xlu0 %673
        %676 = vrot.lane.b32.xlu0 %v413, 126
        %v677 = vpop.permute.xlu0 %676
        %v679 = vsel %vm421, %v669, 0
        %v681 = vsel %vm424, %v677, 0
        %683 = vmatprep.subr.mxu0 0.0
        %684 = vmatpush1.msra.mxu0 %v681
        %685 = vmatprep.subr.mxu0 0.0
        %686 = vmatpush1.msra.mxu0 0.0
        %687 = vmatprep.subr.mxu0 0.0
        %688 = vmatpush1.msra.mxu0 0.0
        %689 = vmatprep.subr.mxu0 0.0
        %690 = vmatpush1.msra.mxu0 0.0
        %691 = vmatprep.subr.mxu0 0.0
        %692 = vmatpush1.msra.mxu0 0.0
        %693 = vmatprep.subr.mxu0 0.0
        %694 = vmatpush1.msra.mxu0 0.0
        %695 = vmatprep.subr.mxu0 0.0
        %696 = vmatpush1.msra.mxu0 0.0
        %697 = vmatprep.subr.mxu0 0.0
        %698 = vmatpush1.msra.mxu0 0.0
        %699 = vmatprep.subr.mxu0 0.0
        %700 = vmatpush1.msra.mxu0 0.0
        %701 = vmatprep.subr.mxu0 0.0
        %702 = vmatpush1.msra.mxu0 0.0
        %703 = vmatprep.subr.mxu0 0.0
        %704 = vmatpush1.msra.mxu0 0.0
        %705 = vmatprep.subr.mxu0 0.0
        %706 = vmatpush1.msra.mxu0 0.0
        %707 = vmatprep.subr.mxu0 0.0
        %708 = vmatpush1.msra.mxu0 0.0
        %709 = vmatprep.subr.mxu0 0.0
        %710 = vmatpush1.msra.mxu0 0.0
        %711 = vmatprep.subr.mxu0 0.0
        %712 = vmatpush1.msra.mxu0 0.0
        %713 = vmatprep.subr.mxu0 0.0
        %714 = vmatpush1.msra.mxu0 0.0
        %715 = vmatprep.subr.mxu0 0.0
        %716 = vmatpush1.msra.mxu0 0.0
        %717 = vmatprep.subr.mxu0 0.0
        %718 = vmatpush1.msra.mxu0 0.0
        %719 = vmatprep.subr.mxu0 0.0
        %720 = vmatpush1.msra.mxu0 0.0
        %721 = vmatprep.subr.mxu0 0.0
        %722 = vmatpush1.msra.mxu0 0.0
        %723 = vmatprep.subr.mxu0 0.0
        %724 = vmatpush1.msra.mxu0 0.0
        %725 = vmatprep.subr.mxu0 0.0
        %726 = vmatpush1.msra.mxu0 0.0
        %727 = vmatprep.subr.mxu0 0.0
        %728 = vmatpush1.msra.mxu0 0.0
        %729 = vmatprep.subr.mxu0 0.0
        %730 = vmatpush1.msra.mxu0 0.0
        %731 = vmatprep.subr.mxu0 0.0
        %732 = vmatpush1.msra.mxu0 0.0
        %733 = vmatprep.subr.mxu0 0.0
        %734 = vmatpush1.msra.mxu0 0.0
        %735 = vmatprep.subr.mxu0 0.0
        %736 = vmatpush1.msra.mxu0 0.0
        %737 = vmatprep.subr.mxu0 0.0
        %738 = vmatpush1.msra.mxu0 0.0
        %739 = vmatprep.subr.mxu0 0.0
        %740 = vmatpush1.msra.mxu0 0.0
        %741 = vmatprep.subr.mxu0 0.0
        %742 = vmatpush1.msra.mxu0 0.0
        %743 = vmatprep.subr.mxu0 0.0
        %744 = vmatpush1.msra.mxu0 0.0
        %745 = vmatprep.subr.mxu0 0.0
        %746 = vmatpush1.msra.mxu0 0.0
        %747 = vmatprep.mubr.f32.mxu0 0.0
        %748 = vmatmul.mubr.f32.gmra.mrb[0].mxu0 %v679
        %v749 = vpop.f32.mrb[0].mxu0
        %v750 = vadd.f32 %v674, %v749
        %v751 = vpop.f32.mrb[0].mxu0
        %752 = vdwg.mxu0
        %v753 = vadd.f32 %v668, %v750
        %v754 = vmax.f32 %v753, 0.0
        %vm755 = vcmp.ge.s32.totalorder %v580, 4
        %v756 = vsel %vm755, %v754, 0.0
        %758 = vrot.lane.b32.xlu0 %v756, 126
        %v759 = vpop.permute.xlu0 %758
        %v761 = vld [vmem:[%s7] sm:$0xff]
        %v762 = vld [vmem:[%s8] sm:$0xff]
        %764 = vset.pattern.permute.xlu0 0
        %765 = vperm.xlu0 %764, %v762
        %v766 = vpop.permute.xlu0 %765
        %v769 = vsel %vm594, %v761, 0
        %771 = vmatprep.subr.mxu0 0.0
        %772 = vmatpush1.msra.mxu0 %v756
        %773 = vmatprep.subr.mxu0 0.0
        %774 = vmatpush1.msra.mxu0 %v759
        %775 = vmatprep.subr.mxu0 0.0
        %776 = vmatpush1.msra.mxu0 0.0
        %777 = vmatprep.subr.mxu0 0.0
        %778 = vmatpush1.msra.mxu0 0.0
        %779 = vmatprep.subr.mxu0 0.0
        %780 = vmatpush1.msra.mxu0 0.0
        %781 = vmatprep.subr.mxu0 0.0
        %782 = vmatpush1.msra.mxu0 0.0
        %783 = vmatprep.subr.mxu0 0.0
        %784 = vmatpush1.msra.mxu0 0.0
        %785 = vmatprep.subr.mxu0 0.0
        %786 = vmatpush1.msra.mxu0 0.0
        %787 = vmatprep.subr.mxu0 0.0
        %788 = vmatpush1.msra.mxu0 0.0
        %789 = vmatprep.subr.mxu0 0.0
        %790 = vmatpush1.msra.mxu0 0.0
        %791 = vmatprep.subr.mxu0 0.0
        %792 = vmatpush1.msra.mxu0 0.0
        %793 = vmatprep.subr.mxu0 0.0
        %794 = vmatpush1.msra.mxu0 0.0
        %795 = vmatprep.subr.mxu0 0.0
        %796 = vmatpush1.msra.mxu0 0.0
        %797 = vmatprep.subr.mxu0 0.0
        %798 = vmatpush1.msra.mxu0 0.0
        %799 = vmatprep.subr.mxu0 0.0
        %800 = vmatpush1.msra.mxu0 0.0
        %801 = vmatprep.subr.mxu0 0.0
        %802 = vmatpush1.msra.mxu0 0.0
        %803 = vmatprep.subr.mxu0 0.0
        %804 = vmatpush1.msra.mxu0 0.0
        %805 = vmatprep.subr.mxu0 0.0
        %806 = vmatpush1.msra.mxu0 0.0
        %807 = vmatprep.subr.mxu0 0.0
        %808 = vmatpush1.msra.mxu0 0.0
        %809 = vmatprep.subr.mxu0 0.0
        %810 = vmatpush1.msra.mxu0 0.0
        %811 = vmatprep.subr.mxu0 0.0
        %812 = vmatpush1.msra.mxu0 0.0
        %813 = vmatprep.subr.mxu0 0.0
        %814 = vmatpush1.msra.mxu0 0.0
        %815 = vmatprep.subr.mxu0 0.0
        %816 = vmatpush1.msra.mxu0 0.0
        %817 = vmatprep.subr.mxu0 0.0
        %818 = vmatpush1.msra.mxu0 0.0
        %819 = vmatprep.subr.mxu0 0.0
        %820 = vmatpush1.msra.mxu0 0.0
        %821 = vmatprep.subr.mxu0 0.0
        %822 = vmatpush1.msra.mxu0 0.0
        %823 = vmatprep.subr.mxu0 0.0
        %824 = vmatpush1.msra.mxu0 0.0
        %825 = vmatprep.subr.mxu0 0.0
        %826 = vmatpush1.msra.mxu0 0.0
        %827 = vmatprep.subr.mxu0 0.0
        %828 = vmatpush1.msra.mxu0 0.0
        %829 = vmatprep.subr.mxu0 0.0
        %830 = vmatpush1.msra.mxu0 0.0
        %831 = vmatprep.subr.mxu0 0.0
        %832 = vmatpush1.msra.mxu0 0.0
        %833 = vmatprep.subr.mxu0 0.0
        %834 = vmatpush1.msra.mxu0 0.0
        %835 = vmatprep.mubr.f32.mxu0 0.0
        %836 = vmatmul.mubr.f32.gmra.mrb[0].mxu0 %v769
        %v837 = vpop.f32.mrb[0].mxu0
        %v838 = vadd.f32 %v766, %v837
        %v839 = vpop.f32.mrb[0].mxu0
        %840 = vdwg.mxu0
        %v841 = vmax.f32 %v838, 0.0
        %vm842 = vcmp.ge.s32.totalorder %v580, 2
        %v843 = vsel %vm842, %v841, 0.0
        %845 = vrot.lane.b32.xlu0 %v843, 126
        %v846 = vpop.permute.xlu0 %845
        %v848 = vld [vmem:[%s9] sm:$0xff]
        %v849 = vld [vmem:[%s10] sm:$0xff]
        %851 = vset.pattern.permute.xlu0 0
        %852 = vperm.xlu0 %851, %v849
        %v853 = vpop.permute.xlu0 %852
        %v856 = vsel %vm594, %v848, 0
        %858 = vmatprep.subr.mxu0 0.0
        %859 = vmatpush1.msra.mxu0 %v843
        %860 = vmatprep.subr.mxu0 0.0
        %861 = vmatpush1.msra.mxu0 %v846
        %862 = vmatprep.subr.mxu0 0.0
        %863 = vmatpush1.msra.mxu0 0.0
        %864 = vmatprep.subr.mxu0 0.0
        %865 = vmatpush1.msra.mxu0 0.0
        %866 = vmatprep.subr.mxu0 0.0
        %867 = vmatpush1.msra.mxu0 0.0
        %868 = vmatprep.subr.mxu0 0.0
        %869 = vmatpush1.msra.mxu0 0.0
        %870 = vmatprep.subr.mxu0 0.0
        %871 = vmatpush1.msra.mxu0 0.0
        %872 = vmatprep.subr.mxu0 0.0
        %873 = vmatpush1.msra.mxu0 0.0
        %874 = vmatprep.subr.mxu0 0.0
        %875 = vmatpush1.msra.mxu0 0.0
        %876 = vmatprep.subr.mxu0 0.0
        %877 = vmatpush1.msra.mxu0 0.0
        %878 = vmatprep.subr.mxu0 0.0
        %879 = vmatpush1.msra.mxu0 0.0
        %880 = vmatprep.subr.mxu0 0.0
        %881 = vmatpush1.msra.mxu0 0.0
        %882 = vmatprep.subr.mxu0 0.0
        %883 = vmatpush1.msra.mxu0 0.0
        %884 = vmatprep.subr.mxu0 0.0
        %885 = vmatpush1.msra.mxu0 0.0
        %886 = vmatprep.subr.mxu0 0.0
        %887 = vmatpush1.msra.mxu0 0.0
        %888 = vmatprep.subr.mxu0 0.0
        %889 = vmatpush1.msra.mxu0 0.0
        %890 = vmatprep.subr.mxu0 0.0
        %891 = vmatpush1.msra.mxu0 0.0
        %892 = vmatprep.subr.mxu0 0.0
        %893 = vmatpush1.msra.mxu0 0.0
        %894 = vmatprep.subr.mxu0 0.0
        %895 = vmatpush1.msra.mxu0 0.0
        %896 = vmatprep.subr.mxu0 0.0
        %897 = vmatpush1.msra.mxu0 0.0
        %898 = vmatprep.subr.mxu0 0.0
        %899 = vmatpush1.msra.mxu0 0.0
        %900 = vmatprep.subr.mxu0 0.0
        %901 = vmatpush1.msra.mxu0 0.0
        %902 = vmatprep.subr.mxu0 0.0
        %903 = vmatpush1.msra.mxu0 0.0
        %904 = vmatprep.subr.mxu0 0.0
        %905 = vmatpush1.msra.mxu0 0.0
        %906 = vmatprep.subr.mxu0 0.0
        %907 = vmatpush1.msra.mxu0 0.0
        %908 = vmatprep.subr.mxu0 0.0
        %909 = vmatpush1.msra.mxu0 0.0
        %910 = vmatprep.subr.mxu0 0.0
        %911 = vmatpush1.msra.mxu0 0.0
        %912 = vmatprep.subr.mxu0 0.0
        %913 = vmatpush1.msra.mxu0 0.0
        %914 = vmatprep.subr.mxu0 0.0
        %915 = vmatpush1.msra.mxu0 0.0
        %916 = vmatprep.subr.mxu0 0.0
        %917 = vmatpush1.msra.mxu0 0.0
        %918 = vmatprep.subr.mxu0 0.0
        %919 = vmatpush1.msra.mxu0 0.0
        %920 = vmatprep.subr.mxu0 0.0
        %921 = vmatpush1.msra.mxu0 0.0
        %922 = vmatprep.mubr.f32.mxu0 0.0
        %923 = vmatmul.mubr.f32.gmra.mrb[0].mxu0 %v856
        %v924 = vpop.f32.mrb[0].mxu0
        %v925 = vadd.f32 %v853, %v924
        %v926 = vpop.f32.mrb[0].mxu0
        %927 = vdwg.mxu0
        %v928 = vmax.f32 %v925, 0.0
        %929 = vrot.lane.b32.xlu0 %v756, 124
        %v930 = vpop.permute.xlu0 %929
        %v932 = vadd.f32 %v928, %v930
        %v933 = vmax.f32 %v932, 0.0
        %934 = vst.msk [vmem:[%s399] sm:$0xff] %vm594, %v933
        %s935 = sand.u32 %s285, 1
        %s936 = scalar_lea.sflag [#allocation3], %s935
        %s937 = sand.u32 %s285, 1
        %s938 = smul.addr %s937, 8
        %s939 = scalar_lea.vmem [#allocation2], %s938
        // Predicated region
        $region65: #{tpu_custom_call.1} parent=63 // pred_check
          %p940 = pneg %p295
        $region66: #{tpu_custom_call.1} parent=63 // pred_check_branch
          %942 = sbr.rel (%p940) target = $region68
        $region67: #{tpu_custom_call.1} parent=63 // pred_region
          %s944 = ssub.s32 128, 128
          %945 = vsyncadd %s936, %s944
          %s946 = sadd.s32 %s30, %s29
          %s947 = smul.addr %s946, 128
          %s948 = scalar_lea.hbm %s11, %s947
          %s950 = sshll.u32 %s939, 4
          %s951 = int_to_ptr.vmem [resolvable:$true] %s950
          %953 = dma.vmem_to_hbm [thread:$0]  %s951, 128, %s948, %s936
        $region68: #{tpu_custom_call.1} parent=63 // pred_fallthru
          _
      $region64: #{tpu_custom_call.1} parent=5 // pred_fallthru
        _
      %p954 = scmp.le.s32.totalorder 2, %s20
      // Predicated region
      $region69: #{tpu_custom_call.1} parent=5 // pred_check
        %p955 = pneg %p954
      $region70: #{tpu_custom_call.1} parent=5 // pred_check_branch
        %957 = sbr.rel (%p955) target = $region72
      $region71: #{tpu_custom_call.1} parent=5 // pred_region
        %s958 = ssub.s32 %s20, 2
        // Predicated region
        $region73: #{tpu_custom_call.1} parent=71 // pred_check
          %p959 = pneg %p301
        $region74: #{tpu_custom_call.1} parent=71 // pred_check_branch
          %961 = sbr.rel (%p959) target = $region76
        $region75: #{tpu_custom_call.1} parent=71 // pred_region
          %s962 = sand.u32 %s286, 1
          %s963 = scalar_lea.sflag [#allocation3], %s962
          %s964 = sand.u32 %s286, 1
          %s965 = smul.addr %s964, 8
          %s966 = scalar_lea.vmem [#allocation2], %s965
          %967 = dma.done %s963, 128
        $region76: #{tpu_custom_call.1} parent=71 // pred_fallthru
          _
      $region72: #{tpu_custom_call.1} parent=5 // pred_fallthru
        _
    $region6: #{tpu_custom_call.1} parent=1 // loop_footer
      %s24 = sadd.s32 1, %s20
    $region7: #{tpu_custom_call.1} parent=1 // loop_footer_branch
      %19 = sbr.rel target = $region3
    $region8: #{tpu_custom_call.1} parent=1 // loop_exit
      _
    %968 = vsyncpa [#allocation3], 1
    %s969 = scalar_lea.sflag [#allocation3], 1
    %970 = vsyncpa %s969, 1

</llo_original>
